<compile_context>
chip_gen: v5e
topology: v5e:2x2
jax: 0.10.0
libtpu: 0.0.40
codegen_flags: <defaults>
</compile_context>

<pallas_src>
import math
import jax
import jax.numpy as jnp
from jax.experimental import pallas as pl
from jax.experimental.pallas import tpu as pltpu


def _round_up(n, m):
    return (n + m - 1) // m * m


def mlp_kernel(x_ref, w1_ref, b1_ref, w2_ref, b2_ref, w3_ref, b3_ref, o_ref):
    # In-kernel bf16 cast of the activations (cheap VPU op, hidden under MXU work);
    # every dot accumulates in f32 via preferred_element_type.
    x = x_ref[...].astype(jnp.bfloat16)
    # Layer 1: Linear + bias + ReLU (bias add / ReLU in f32; keep only bf16 live after).
    h1 = jnp.dot(x, w1_ref[...], preferred_element_type=jnp.float32)
    h1 = jnp.maximum(h1 + b1_ref[...], 0.0).astype(jnp.bfloat16)
    # (Dropout -> identity in eval mode)
    # Layer 2
    h2 = jnp.dot(h1, w2_ref[...], preferred_element_type=jnp.float32)
    h2 = jnp.maximum(h2 + b2_ref[...], 0.0).astype(jnp.bfloat16)
    # (Dropout -> identity in eval mode)
    # Layer 3: logits (store bf16, lane-dense)
    out = jnp.dot(h2, w3_ref[...], preferred_element_type=jnp.float32)
    o_ref[...] = (out + b3_ref[...]).astype(o_ref.dtype)


def prepare_params(params, *, lane=128):
    """One-time pad + bf16 cast of the MLP parameters.

    The returned dict is the canonical parameter storage handed to mlp_forward on
    every call, so no per-call weight padding/casting ops hit HBM.
    """
    D, H = params["w1"].shape
    T = params["w3"].shape[1]
    H_p, T_p = _round_up(H, lane), _round_up(T, lane)

    def pad2(a, rows, cols, dtype):
        a = jnp.asarray(a, jnp.float32)
        a = jnp.pad(a, ((0, rows - a.shape[0]), (0, cols - a.shape[1])))
        return a.astype(dtype)

    return {
        # The input K (=D) stays at its true width (full-extent block); only MXU N
        # dims / output lanes are padded to 128 for lane-dense layout.
        "w1": pad2(params["w1"], D, H_p, jnp.bfloat16),
        "b1": pad2(params["b1"], 1, H_p, jnp.float32),
        "w2": pad2(params["w2"], H_p, H_p, jnp.bfloat16),
        "b2": pad2(params["b2"], 1, H_p, jnp.float32),
        "w3": pad2(params["w3"], H_p, T_p, jnp.bfloat16),
        "b3": pad2(params["b3"], 1, T_p, jnp.float32),
        "dims": (int(D), int(H), int(T)),
    }


def mlp_forward(x, prepared, *, n_steps=2, tile_b=None, out_dtype=jnp.bfloat16):
    """x: (B, input_layer) float32. prepared: output of prepare_params()."""
    B, D = x.shape
    D_w, H, T = prepared["dims"]
    assert D == D_w, f"input width {D} != parameter width {D_w}"
    H_p = prepared["w1"].shape[1]
    T_p = prepared["w3"].shape[1]

    # Few, large batch tiles: amortize the ~0.35us/step grid overhead while keeping an
    # even grid >= 2 so ("parallel",) can shard across v7x's two TensorCores.
    if tile_b is None:
        tile_b = max(8, _round_up(pl.cdiv(B, n_steps), 8))
    tile_b = max(8, _round_up(tile_b, 8))
    grid_b = pl.cdiv(B, tile_b)
    B_p = grid_b * tile_b

    # Minimal batch padding (< tile_b rows; zero when B is already a tile multiple).
    # x stays f32 -- the bf16 cast happens inside the kernel.
    if B_p != B:
        x = jnp.pad(x, ((0, B_p - B), (0, 0)))

    w_bytes = (prepared["w1"].size + prepared["w2"].size + prepared["w3"].size) * 2
    b_bytes = (prepared["b1"].size + prepared["b2"].size + prepared["b3"].size) * 4
    out_itemsize = jnp.dtype(out_dtype).itemsize

    flops = 2 * B_p * (D * H_p + H_p * H_p + H_p * T_p)
    bytes_accessed = int(x.size * 4 + w_bytes + b_bytes + B_p * T_p * out_itemsize)

    resident = int(
        2 * w_bytes + 2 * b_bytes                # weight/bias pipeline buffers
        + 2 * tile_b * D * 4                     # double-buffered x tile (f32)
        + 2 * tile_b * T_p * out_itemsize        # double-buffered out tile
        + tile_b * H_p * (4 + 2) * 2)            # live h1/h2 (f32 acc + bf16 copy)
    # Chip-aware VMEM budget: v7x physical VMEM is 64 MiB (vs 128 MiB on v5e/v6e), so
    # cap the request at 48 MiB -- fits every generation with headroom.
    vmem_limit = int(min(48 << 20, max(8 << 20, 4 * resident)))

    def const_spec(shape):
        # Constant index_map: the pipeline DMAs this block only once (first step).
        return pl.BlockSpec(shape, lambda i: (0, 0))

    out = pl.pallas_call(
        mlp_kernel,
        out_shape=jax.ShapeDtypeStruct((B_p, T_p), out_dtype),
        grid=(grid_b,),
        in_specs=[
            pl.BlockSpec((tile_b, D), lambda i: (i, 0)),   # x (f32, true K width)
            const_spec((D, H_p)),                          # w1 (bf16)
            const_spec((1, H_p)),                          # b1 (f32)
            const_spec((H_p, H_p)),                        # w2 (bf16)
            const_spec((1, H_p)),                          # b2 (f32)
            const_spec((H_p, T_p)),                        # w3 (bf16)
            const_spec((1, T_p)),                          # b3 (f32)
        ],
        out_specs=pl.BlockSpec((tile_b, T_p), lambda i: (i, 0)),
        compiler_params=pltpu.CompilerParams(
            dimension_semantics=("parallel",),
            vmem_limit_bytes=vmem_limit,
        ),
        cost_estimate=pl.CostEstimate(
            flops=flops, transcendentals=0, bytes_accessed=bytes_accessed),
    )(x, prepared["w1"], prepared["b1"], prepared["w2"], prepared["b2"],
      prepared["w3"], prepared["b3"])

    # Slice away batch / tagset padding (cheap; B_p == B when B is a tile multiple).
    return out[:B, :T]


def xavier_uniform(key, fan_in, fan_out):
    # Matches torch.nn.init.xavier_uniform_: U(-a, a), a = sqrt(6/(fan_in+fan_out)).
    # Stored as (fan_in, fan_out) so the kernel computes x @ W (== x @ weight.T in torch).
    a = math.sqrt(6.0 / (fan_in + fan_out))
    return jax.random.uniform(key, (fan_in, fan_out), jnp.float32, -a, a)


def init_mlp_params(key, input_layer, hidden_layer, tagset_size):
    k1, k2, k3 = jax.random.split(key, 3)
    return {
        "w1": xavier_uniform(k1, input_layer, hidden_layer),
        "b1": jnp.full((1, hidden_layer), 0.01, jnp.float32),
        "w2": xavier_uniform(k2, hidden_layer, hidden_layer),
        "b2": jnp.full((1, hidden_layer), 0.01, jnp.float32),
        "w3": xavier_uniform(k3, hidden_layer, tagset_size),
        "b3": jnp.full((1, tagset_size), 0.01, jnp.float32),
    }


if __name__ == "__main__":
    # Small, deterministic shapes consistent with the module's forward:
    # encoded: (batch, input_layer)
    batch = 256
    input_layer = 32
    hidden_layer = 32
    tagset_size = 16

    key = jax.random.PRNGKey(0)
    k_x, k_p = jax.random.split(key)
    x = jax.random.normal(k_x, (batch, input_layer), jnp.float32)
    params = init_mlp_params(k_p, input_layer, hidden_layer, tagset_size)

    # One-time parameter prep (pad + bf16 cast); reused across forward calls.
    prepared = prepare_params(params)

    # Default: 2-step parallel grid (128 rows/step) -> megacore-friendly on v7x,
    # minimal per-step overhead on v5e/v6e.
    out = mlp_forward(x, prepared)
    out = jax.block_until_ready(out)
    assert out.shape == (batch, tagset_size)
    out_f32 = out.astype(jnp.float32)

    # Reference with matching bf16 operand quantization and f32 accumulation.
    def q(a):
        return a.astype(jnp.bfloat16).astype(jnp.float32)

    h1 = q(jnp.maximum(q(x) @ q(params["w1"]) + params["b1"], 0.0))
    h2 = q(jnp.maximum(h1 @ q(params["w2"]) + params["b2"], 0.0))
    ref = q(h2 @ q(params["w3"]) + params["b3"])   # output also bf16-rounded
    assert jnp.allclose(out_f32, ref, atol=3e-2, rtol=3e-2)

    # Loose sanity check against the pure-f32 reference (bf16 rounding tolerance).
    h1f = jnp.maximum(x @ params["w1"] + params["b1"], 0.0)
    h2f = jnp.maximum(h1f @ params["w2"] + params["b2"], 0.0)
    reff = h2f @ params["w3"] + params["b3"]
    assert jnp.allclose(out_f32, reff, atol=1e-1, rtol=1e-1)

    print("KERNEL_OK")
</pallas_src>

<mosaic_0001>
module attributes {stable_mosaic.version = 11 : i64} {
  func.func @mlp_kernel(%arg0: i32, %arg1: memref<128x32xf32, #tpu.memory_space<vmem>>, %arg2: memref<32x128xbf16, #tpu.memory_space<vmem>>, %arg3: memref<1x128xf32, #tpu.memory_space<vmem>>, %arg4: memref<128x128xbf16, #tpu.memory_space<vmem>>, %arg5: memref<1x128xf32, #tpu.memory_space<vmem>>, %arg6: memref<128x128xbf16, #tpu.memory_space<vmem>>, %arg7: memref<1x128xf32, #tpu.memory_space<vmem>>, %arg8: memref<128x128xbf16, #tpu.memory_space<vmem>>) attributes {dimension_semantics = [#tpu.dimension_semantics<parallel>], iteration_bounds = array<i64: 2>, scalar_prefetch = 0 : i64, scratch_operands = 0 : i64, tpu.core_type = #tpu.core_type<tc>, window_params = [{transform_indices = @transform_0, window_bounds = array<i64: 128, 32>}, {pipeline_mode = #tpu.pipeline_mode<synchronous>, transform_indices = @transform_1, window_bounds = array<i64: 32, 128>}, {pipeline_mode = #tpu.pipeline_mode<synchronous>, transform_indices = @transform_2, window_bounds = array<i64: 1, 128>}, {pipeline_mode = #tpu.pipeline_mode<synchronous>, transform_indices = @transform_3, window_bounds = array<i64: 128, 128>}, {pipeline_mode = #tpu.pipeline_mode<synchronous>, transform_indices = @transform_4, window_bounds = array<i64: 1, 128>}, {pipeline_mode = #tpu.pipeline_mode<synchronous>, transform_indices = @transform_5, window_bounds = array<i64: 128, 128>}, {pipeline_mode = #tpu.pipeline_mode<synchronous>, transform_indices = @transform_6, window_bounds = array<i64: 1, 128>}, {transform_indices = @transform_7, window_bounds = array<i64: 128, 128>}]} {
    %c0 = arith.constant 0 : index
    %c0_0 = arith.constant 0 : index
    %0 = vector.load %arg1[%c0, %c0_0] : memref<128x32xf32, #tpu.memory_space<vmem>>, vector<128x32xf32>
    %1 = arith.truncf %0 : vector<128x32xf32> to vector<128x32xbf16>
    %c0_1 = arith.constant 0 : index
    %c0_2 = arith.constant 0 : index
    %2 = vector.load %arg2[%c0_1, %c0_2] : memref<32x128xbf16, #tpu.memory_space<vmem>>, vector<32x128xbf16>
    %cst = arith.constant dense<0.000000e+00> : vector<128x128xf32>
    %3 = tpu.matmul %1, %2, %cst {dimension_numbers = #tpu.dot_dimension_numbers<[1], [0], [0], [1], [0, 0, 1, 1], [], []>} : vector<128x32xbf16>, vector<32x128xbf16>, vector<128x128xf32> -> vector<128x128xf32>
    %c0_3 = arith.constant 0 : index
    %c0_4 = arith.constant 0 : index
    %4 = vector.load %arg3[%c0_3, %c0_4] : memref<1x128xf32, #tpu.memory_space<vmem>>, vector<1x128xf32>
    %5 = vector.broadcast %4 : vector<1x128xf32> to vector<128x128xf32>
    %6 = arith.addf %3, %5 : vector<128x128xf32>
    %cst_5 = arith.constant 0.000000e+00 : f32
    %7 = vector.broadcast %cst_5 : f32 to vector<128x128xf32>
    %8 = arith.maximumf %6, %7 : vector<128x128xf32>
    %9 = arith.truncf %8 : vector<128x128xf32> to vector<128x128xbf16>
    %c0_6 = arith.constant 0 : index
    %c0_7 = arith.constant 0 : index
    %10 = vector.load %arg4[%c0_6, %c0_7] : memref<128x128xbf16, #tpu.memory_space<vmem>>, vector<128x128xbf16>
    %cst_8 = arith.constant dense<0.000000e+00> : vector<128x128xf32>
    %11 = tpu.matmul %9, %10, %cst_8 {dimension_numbers = #tpu.dot_dimension_numbers<[1], [0], [0], [1], [0, 0, 1, 1], [], []>} : vector<128x128xbf16>, vector<128x128xbf16>, vector<128x128xf32> -> vector<128x128xf32>
    %c0_9 = arith.constant 0 : index
    %c0_10 = arith.constant 0 : index
    %12 = vector.load %arg5[%c0_9, %c0_10] : memref<1x128xf32, #tpu.memory_space<vmem>>, vector<1x128xf32>
    %13 = vector.broadcast %12 : vector<1x128xf32> to vector<128x128xf32>
    %14 = arith.addf %11, %13 : vector<128x128xf32>
    %cst_11 = arith.constant 0.000000e+00 : f32
    %15 = vector.broadcast %cst_11 : f32 to vector<128x128xf32>
    %16 = arith.maximumf %14, %15 : vector<128x128xf32>
    %17 = arith.truncf %16 : vector<128x128xf32> to vector<128x128xbf16>
    %c0_12 = arith.constant 0 : index
    %c0_13 = arith.constant 0 : index
    %18 = vector.load %arg6[%c0_12, %c0_13] : memref<128x128xbf16, #tpu.memory_space<vmem>>, vector<128x128xbf16>
    %cst_14 = arith.constant dense<0.000000e+00> : vector<128x128xf32>
    %19 = tpu.matmul %17, %18, %cst_14 {dimension_numbers = #tpu.dot_dimension_numbers<[1], [0], [0], [1], [0, 0, 1, 1], [], []>} : vector<128x128xbf16>, vector<128x128xbf16>, vector<128x128xf32> -> vector<128x128xf32>
    %c0_15 = arith.constant 0 : index
    %c0_16 = arith.constant 0 : index
    %20 = vector.load %arg7[%c0_15, %c0_16] : memref<1x128xf32, #tpu.memory_space<vmem>>, vector<1x128xf32>
    %21 = vector.broadcast %20 : vector<1x128xf32> to vector<128x128xf32>
    %22 = arith.addf %19, %21 : vector<128x128xf32>
    %23 = arith.truncf %22 : vector<128x128xf32> to vector<128x128xbf16>
    %c0_17 = arith.constant 0 : index
    %c0_18 = arith.constant 0 : index
    %24 = vector.load %arg8[%c0_17, %c0_18] : memref<128x128xbf16, #tpu.memory_space<vmem>>, vector<128x128xbf16>
    tpu.vector_store %arg8[%c0_17, %c0_18], %23 {strides = array<i32>} : memref<128x128xbf16, #tpu.memory_space<vmem>>, vector<128x128xbf16>,
    return
  }
  func.func @transform_0(%arg0: i32) -> (i32, i32) {
    %c0_i32 = arith.constant 0 : i32
    %c0_i32_0 = arith.constant 0 : i32
    return %arg0, %c0_i32 : i32, i32
  }
  func.func @transform_1(%arg0: i32) -> (i32, i32) {
    %c0_i32 = arith.constant 0 : i32
    %c0_i32_0 = arith.constant 0 : i32
    %c0_i32_1 = arith.constant 0 : i32
    return %c0_i32, %c0_i32_0 : i32, i32
  }
  func.func @transform_2(%arg0: i32) -> (i32, i32) {
    %c0_i32 = arith.constant 0 : i32
    %c0_i32_0 = arith.constant 0 : i32
    %c0_i32_1 = arith.constant 0 : i32
    return %c0_i32, %c0_i32_0 : i32, i32
  }
  func.func @transform_3(%arg0: i32) -> (i32, i32) {
    %c0_i32 = arith.constant 0 : i32
    %c0_i32_0 = arith.constant 0 : i32
    %c0_i32_1 = arith.constant 0 : i32
    return %c0_i32, %c0_i32_0 : i32, i32
  }
  func.func @transform_4(%arg0: i32) -> (i32, i32) {
    %c0_i32 = arith.constant 0 : i32
    %c0_i32_0 = arith.constant 0 : i32
    %c0_i32_1 = arith.constant 0 : i32
    return %c0_i32, %c0_i32_0 : i32, i32
  }
  func.func @transform_5(%arg0: i32) -> (i32, i32) {
    %c0_i32 = arith.constant 0 : i32
    %c0_i32_0 = arith.constant 0 : i32
    %c0_i32_1 = arith.constant 0 : i32
    return %c0_i32, %c0_i32_0 : i32, i32
  }
  func.func @transform_6(%arg0: i32) -> (i32, i32) {
    %c0_i32 = arith.constant 0 : i32
    %c0_i32_0 = arith.constant 0 : i32
    %c0_i32_1 = arith.constant 0 : i32
    return %c0_i32, %c0_i32_0 : i32, i32
  }
  func.func @transform_7(%arg0: i32) -> (i32, i32) {
    %c0_i32 = arith.constant 0 : i32
    %c0_i32_0 = arith.constant 0 : i32
    return %arg0, %c0_i32 : i32, i32
  }
}

</mosaic_0001>

<llo_original>
// kernel: tpu_custom_call.1
$region0: #{tpu_custom_call.1}
  #allocation0 [shape = 'u32[]', space=smem, size = 0x4, offset = 0x4, fixed_abs, tag = 'smem constant byte address 0x4 - core index']
  #allocation1 [shape = 'u32[72,128]{1,0:T(1,128)}', space=vmem, size = 0x9000, scoped, tag = 'internal scratch']
  %s0 = inlined_call_operand.vmem [shape: f32[256,32], index: 0, kind: input, shape index: {}]
  %s1 = inlined_call_operand.vmem [shape: bf16[32,128], index: 1, kind: input, shape index: {}]
  %s2 = inlined_call_operand.vmem [shape: f32[1,128], index: 2, kind: input, shape index: {}]
  %s3 = inlined_call_operand.vmem [shape: bf16[128,128], index: 3, kind: input, shape index: {}]
  %s4 = inlined_call_operand.vmem [shape: f32[1,128], index: 4, kind: input, shape index: {}]
  %s5 = inlined_call_operand.vmem [shape: bf16[128,128], index: 5, kind: input, shape index: {}]
  %s6 = inlined_call_operand.vmem [shape: f32[1,128], index: 6, kind: input, shape index: {}]
  %s7 = inlined_call_operand.hbm [shape: bf16[256,128], index: 7, kind: output, shape index: {}]
  %s8 = sld [smem:[#allocation0]]
  $region61: #{tpu_custom_call.1} parent=0
    _
  %s10 = ssub.s32 1, %s8
  %s11 = scalar_select 0, %s10, %s8
  $region1: #{tpu_custom_call.1} parent=0
    #allocation2 [shape = 'u8[65536]{0}', space=vmem, size = 0x10000, scoped, tag = 'output window, operand 0']
    #allocation3 [shape = 's32[2]{0}', space=sflag, size = 0x8, scoped, tag = 'scoped memory for tpu_custom_call.1']
    %12 = vsyncpa [#allocation3], 0
    %s13 = scalar_lea.sflag [#allocation3], 1
    %14 = vsyncpa %s13, 0
    loop: start=0, step=1, limit=4
    $region2: #{tpu_custom_call.1} parent=1 // loop_pre_header
      _
    $region3: #{tpu_custom_call.1} parent=1 // loop_header
      %s16 = sphi 0, %s20
      %p17 = scmp.ge.s32.totalorder %s16, 4
      %s26 = sphi 0, %s28
      %s29 = sphi 0, %s26
      %s30 = sphi 0, %s29
      %s46 = sphi 0, %s30
      %s50 = sphi 0, %s50
      %s52 = sphi 0, %s50
      %s53 = sphi 0, %s52
      %s67 = sphi 0, %s53
      %s71 = sphi 0, %s71
      %s73 = sphi 0, %s71
      %s74 = sphi 0, %s73
      %s88 = sphi 0, %s74
      %s92 = sphi 0, %s92
      %s94 = sphi 0, %s92
      %s95 = sphi 0, %s94
      %s109 = sphi 0, %s95
      %s113 = sphi 0, %s113
      %s115 = sphi 0, %s113
      %s116 = sphi 0, %s115
      %s130 = sphi 0, %s116
      %s134 = sphi 0, %s134
      %s136 = sphi 0, %s134
      %s137 = sphi 0, %s136
      %s151 = sphi 0, %s137
      %s155 = sphi 0, %s155
      %s157 = sphi 0, %s155
      %s158 = sphi 0, %s157
      %s172 = sphi 0, %s158
      %s178 = sphi 0, %s180
      %s181 = sphi 0, %s178
      %s182 = sphi 0, %s181
      %s198 = sphi 0, %s182
    $region4: #{tpu_custom_call.1} parent=1 // loop_header_branch
      %19 = sbr.rel (%p17) target = $region8
    $region5: #{tpu_custom_call.1} parent=1 // loop_body
      %s21 = ssub.s32 %s16, 1
      %s22 = ssub.s32 %s16, 2
      %s23 = sadd.s32 %s16, 1
      %s24 = ssub.s32 %s16, %s23
      %p25 = scmp.eq.s32.totalorder %s24, 0
      %s27 = sadd.s32 %s26, 1
      %s28 = scalar_select %p25, %s26, %s27
      %p31 = pneg %p25
      %p32 = scmp.eq.s32.totalorder %s16, 1
      %p33 = por %p31, %p32
      %p34 = scmp.ne.s32.totalorder %s26, %s29
      %p35 = scmp.eq.s32.totalorder %s16, 0
      %p36 = por %p34, %p35
      %p37 = scmp.ne.s32.totalorder %s26, %s29
      %p38 = scmp.eq.s32.totalorder %s21, 1
      %p39 = por %p37, %p38
      %p40 = scmp.ne.s32.totalorder %s29, %s30
      %p41 = scmp.eq.s32.totalorder %s21, 0
      %p42 = por %p40, %p41
      %p43 = scmp.ne.s32.totalorder %s29, %s30
      %p44 = scmp.eq.s32.totalorder %s22, 1
      %p45 = por %p43, %p44
      %p47 = scmp.ne.s32.totalorder %s30, %s46
      %p48 = scmp.eq.s32.totalorder %s22, 0
      %p49 = por %p47, %p48
      %s51 = sadd.s32 %s50, 1
      %p54 = scmp.eq.s32.totalorder %s16, 1
      %p55 = scmp.ne.s32.totalorder %s50, %s52
      %p56 = scmp.eq.s32.totalorder %s16, 0
      %p57 = por %p55, %p56
      %p58 = scmp.ne.s32.totalorder %s50, %s52
      %p59 = scmp.eq.s32.totalorder %s21, 1
      %p60 = por %p58, %p59
      %p61 = scmp.ne.s32.totalorder %s52, %s53
      %p62 = scmp.eq.s32.totalorder %s21, 0
      %p63 = por %p61, %p62
      %p64 = scmp.ne.s32.totalorder %s52, %s53
      %p65 = scmp.eq.s32.totalorder %s22, 1
      %p66 = por %p64, %p65
      %p68 = scmp.ne.s32.totalorder %s53, %s67
      %p69 = scmp.eq.s32.totalorder %s22, 0
      %p70 = por %p68, %p69
      %s72 = sadd.s32 %s71, 1
      %p75 = scmp.eq.s32.totalorder %s16, 1
      %p76 = scmp.ne.s32.totalorder %s71, %s73
      %p77 = scmp.eq.s32.totalorder %s16, 0
      %p78 = por %p76, %p77
      %p79 = scmp.ne.s32.totalorder %s71, %s73
      %p80 = scmp.eq.s32.totalorder %s21, 1
      %p81 = por %p79, %p80
      %p82 = scmp.ne.s32.totalorder %s73, %s74
      %p83 = scmp.eq.s32.totalorder %s21, 0
      %p84 = por %p82, %p83
      %p85 = scmp.ne.s32.totalorder %s73, %s74
      %p86 = scmp.eq.s32.totalorder %s22, 1
      %p87 = por %p85, %p86
      %p89 = scmp.ne.s32.totalorder %s74, %s88
      %p90 = scmp.eq.s32.totalorder %s22, 0
      %p91 = por %p89, %p90
      %s93 = sadd.s32 %s92, 1
      %p96 = scmp.eq.s32.totalorder %s16, 1
      %p97 = scmp.ne.s32.totalorder %s92, %s94
      %p98 = scmp.eq.s32.totalorder %s16, 0
      %p99 = por %p97, %p98
      %p100 = scmp.ne.s32.totalorder %s92, %s94
      %p101 = scmp.eq.s32.totalorder %s21, 1
      %p102 = por %p100, %p101
      %p103 = scmp.ne.s32.totalorder %s94, %s95
      %p104 = scmp.eq.s32.totalorder %s21, 0
      %p105 = por %p103, %p104
      %p106 = scmp.ne.s32.totalorder %s94, %s95
      %p107 = scmp.eq.s32.totalorder %s22, 1
      %p108 = por %p106, %p107
      %p110 = scmp.ne.s32.totalorder %s95, %s109
      %p111 = scmp.eq.s32.totalorder %s22, 0
      %p112 = por %p110, %p111
      %s114 = sadd.s32 %s113, 1
      %p117 = scmp.eq.s32.totalorder %s16, 1
      %p118 = scmp.ne.s32.totalorder %s113, %s115
      %p119 = scmp.eq.s32.totalorder %s16, 0
      %p120 = por %p118, %p119
      %p121 = scmp.ne.s32.totalorder %s113, %s115
      %p122 = scmp.eq.s32.totalorder %s21, 1
      %p123 = por %p121, %p122
      %p124 = scmp.ne.s32.totalorder %s115, %s116
      %p125 = scmp.eq.s32.totalorder %s21, 0
      %p126 = por %p124, %p125
      %p127 = scmp.ne.s32.totalorder %s115, %s116
      %p128 = scmp.eq.s32.totalorder %s22, 1
      %p129 = por %p127, %p128
      %p131 = scmp.ne.s32.totalorder %s116, %s130
      %p132 = scmp.eq.s32.totalorder %s22, 0
      %p133 = por %p131, %p132
      %s135 = sadd.s32 %s134, 1
      %p138 = scmp.eq.s32.totalorder %s16, 1
      %p139 = scmp.ne.s32.totalorder %s134, %s136
      %p140 = scmp.eq.s32.totalorder %s16, 0
      %p141 = por %p139, %p140
      %p142 = scmp.ne.s32.totalorder %s134, %s136
      %p143 = scmp.eq.s32.totalorder %s21, 1
      %p144 = por %p142, %p143
      %p145 = scmp.ne.s32.totalorder %s136, %s137
      %p146 = scmp.eq.s32.totalorder %s21, 0
      %p147 = por %p145, %p146
      %p148 = scmp.ne.s32.totalorder %s136, %s137
      %p149 = scmp.eq.s32.totalorder %s22, 1
      %p150 = por %p148, %p149
      %p152 = scmp.ne.s32.totalorder %s137, %s151
      %p153 = scmp.eq.s32.totalorder %s22, 0
      %p154 = por %p152, %p153
      %s156 = sadd.s32 %s155, 1
      %p159 = scmp.eq.s32.totalorder %s16, 1
      %p160 = scmp.ne.s32.totalorder %s155, %s157
      %p161 = scmp.eq.s32.totalorder %s16, 0
      %p162 = por %p160, %p161
      %p163 = scmp.ne.s32.totalorder %s155, %s157
      %p164 = scmp.eq.s32.totalorder %s21, 1
      %p165 = por %p163, %p164
      %p166 = scmp.ne.s32.totalorder %s157, %s158
      %p167 = scmp.eq.s32.totalorder %s21, 0
      %p168 = por %p166, %p167
      %p169 = scmp.ne.s32.totalorder %s157, %s158
      %p170 = scmp.eq.s32.totalorder %s22, 1
      %p171 = por %p169, %p170
      %p173 = scmp.ne.s32.totalorder %s158, %s172
      %p174 = scmp.eq.s32.totalorder %s22, 0
      %p175 = por %p173, %p174
      %s176 = ssub.s32 %s16, %s23
      %p177 = scmp.eq.s32.totalorder %s176, 0
      %s179 = sadd.s32 %s178, 1
      %s180 = scalar_select %p177, %s178, %s179
      %p183 = pneg %p177
      %p184 = scmp.eq.s32.totalorder %s16, 1
      %p185 = por %p183, %p184
      %p186 = scmp.ne.s32.totalorder %s178, %s181
      %p187 = scmp.eq.s32.totalorder %s16, 0
      %p188 = por %p186, %p187
      %p189 = scmp.ne.s32.totalorder %s178, %s181
      %p190 = scmp.eq.s32.totalorder %s21, 1
      %p191 = por %p189, %p190
      %p192 = scmp.ne.s32.totalorder %s181, %s182
      %p193 = scmp.eq.s32.totalorder %s21, 0
      %p194 = por %p192, %p193
      %p195 = scmp.ne.s32.totalorder %s181, %s182
      %p196 = scmp.eq.s32.totalorder %s22, 1
      %p197 = por %p195, %p196
      %p199 = scmp.ne.s32.totalorder %s182, %s198
      %p200 = scmp.eq.s32.totalorder %s22, 0
      %p201 = por %p199, %p200
      %p202 = scmp.le.s32.totalorder 1, %s16
      %p203 = scmp.lt.s32.totalorder %s16, 3
      %p204 = pnand %p202, %p203
      %p205 = pneg %p204
      // Predicated region
      $region9: #{tpu_custom_call.1} parent=5 // pred_check
        _
      $region10: #{tpu_custom_call.1} parent=5 // pred_check_branch
        %207 = sbr.rel (%p204) target = $region12
      $region11: #{tpu_custom_call.1} parent=5 // pred_region
        %s208 = ssub.s32 %s16, 1
        // Predicated region
        $region13: #{tpu_custom_call.1} parent=11 // pred_check
          %p209 = pneg %p63
        $region14: #{tpu_custom_call.1} parent=11 // pred_check_branch
          %211 = sbr.rel (%p209) target = $region16
        $region15: #{tpu_custom_call.1} parent=11 // pred_region
          _
        $region16: #{tpu_custom_call.1} parent=11 // pred_fallthru
          _
        // Predicated region
        $region17: #{tpu_custom_call.1} parent=11 // pred_check
          %p212 = pneg %p84
        $region18: #{tpu_custom_call.1} parent=11 // pred_check_branch
          %214 = sbr.rel (%p212) target = $region20
        $region19: #{tpu_custom_call.1} parent=11 // pred_region
          _
        $region20: #{tpu_custom_call.1} parent=11 // pred_fallthru
          _
        // Predicated region
        $region21: #{tpu_custom_call.1} parent=11 // pred_check
          %p215 = pneg %p105
        $region22: #{tpu_custom_call.1} parent=11 // pred_check_branch
          %217 = sbr.rel (%p215) target = $region24
        $region23: #{tpu_custom_call.1} parent=11 // pred_region
          _
        $region24: #{tpu_custom_call.1} parent=11 // pred_fallthru
          _
        // Predicated region
        $region25: #{tpu_custom_call.1} parent=11 // pred_check
          %p218 = pneg %p126
        $region26: #{tpu_custom_call.1} parent=11 // pred_check_branch
          %220 = sbr.rel (%p218) target = $region28
        $region27: #{tpu_custom_call.1} parent=11 // pred_region
          _
        $region28: #{tpu_custom_call.1} parent=11 // pred_fallthru
          _
        // Predicated region
        $region29: #{tpu_custom_call.1} parent=11 // pred_check
          %p221 = pneg %p147
        $region30: #{tpu_custom_call.1} parent=11 // pred_check_branch
          %223 = sbr.rel (%p221) target = $region32
        $region31: #{tpu_custom_call.1} parent=11 // pred_region
          _
        $region32: #{tpu_custom_call.1} parent=11 // pred_fallthru
          _
        // Predicated region
        $region33: #{tpu_custom_call.1} parent=11 // pred_check
          %p224 = pneg %p168
        $region34: #{tpu_custom_call.1} parent=11 // pred_check_branch
          %226 = sbr.rel (%p224) target = $region36
        $region35: #{tpu_custom_call.1} parent=11 // pred_region
          _
        $region36: #{tpu_custom_call.1} parent=11 // pred_fallthru
          _
      $region12: #{tpu_custom_call.1} parent=5 // pred_fallthru
        _
      %p227 = scmp.lt.s32.totalorder %s16, 2
      // Predicated region
      $region37: #{tpu_custom_call.1} parent=5 // pred_check
        %p228 = pneg %p227
      $region38: #{tpu_custom_call.1} parent=5 // pred_check_branch
        %230 = sbr.rel (%p228) target = $region40
      $region39: #{tpu_custom_call.1} parent=5 // pred_region
        // Predicated region
        $region41: #{tpu_custom_call.1} parent=39 // pred_check
          %p231 = pneg %p36
        $region42: #{tpu_custom_call.1} parent=39 // pred_check_branch
          %233 = sbr.rel (%p231) target = $region44
        $region43: #{tpu_custom_call.1} parent=39 // pred_region
          %s234 = smul.u32 16, %s16
          %p235 = scmp.lt.s32.totalorder %s234, 31
          %s236 = scalar_select %p235, %s234, 31
          %s237 = smul.addr %s236, 8
          %s238 = scalar_lea.vmem %s0, %s237
          %s239 = smul.u32 16, %s16
        $region44: #{tpu_custom_call.1} parent=39 // pred_fallthru
          _
      $region40: #{tpu_custom_call.1} parent=5 // pred_fallthru
        _
      %p240 = scmp.le.s32.totalorder 1, %s16
      %p241 = scmp.lt.s32.totalorder %s16, 3
      %p242 = pnand %p240, %p241
      %p243 = pneg %p242
      // Predicated region
      $region45: #{tpu_custom_call.1} parent=5 // pred_check
        _
      $region46: #{tpu_custom_call.1} parent=5 // pred_check_branch
        %245 = sbr.rel (%p242) target = $region48
      $region47: #{tpu_custom_call.1} parent=5 // pred_region
        %s246 = ssub.s32 %s16, 1
        %s247 = smul.u32 16, %s21
        %p248 = scmp.lt.s32.totalorder %s247, 31
        %s249 = scalar_select %p248, %s247, 31
        %s250 = smul.addr %s249, 8
        %s251 = scalar_lea.vmem %s0, %s250
        %p252 = pneg %p42
        %p253 = pneg %p39
        %p254 = pneg %p63
        %p255 = pneg %p60
        %p256 = pneg %p84
        %p257 = pneg %p81
        %p258 = pneg %p105
        %p259 = pneg %p102
        %p260 = pneg %p126
        %p261 = pneg %p123
        %p262 = pneg %p147
        %p263 = pneg %p144
        %p264 = pneg %p168
        %p265 = pneg %p165
        %p266 = pneg %p194
        %p267 = pneg %p191
        %s268 = sand.u32 %s181, 1
        %s269 = scalar_lea.sflag [#allocation3], %s268
        %s270 = sand.u32 %s181, 1
        %s271 = smul.addr %s270, 64
        %s272 = scalar_lea.vmem [#allocation2], %s271
        %s273 = smul.u32 16, %s21
        %p274 = scmp.lt.s32.totalorder %s273, 31
        %s275 = scalar_select %p274, %s273, 31
        %s276 = smul.addr %s275, 8
        %s277 = scalar_lea.vmem %s0, %s276
        %s278 = smul.u32 16, %s21
        %s279 = smul.u32 16, %s21
        %v281 = vld [vmem:[%s277] sm:$0xff]
        %v282 = vld [vmem:[%s277 + $0x8] sm:$0xff]
        %v283 = vld [vmem:[%s277 + $0x10] sm:$0xff]
        %v284 = vld [vmem:[%s277 + $0x18] sm:$0xff]
        %v285 = vld [vmem:[%s277 + $0x20] sm:$0xff]
        %v286 = vld [vmem:[%s277 + $0x28] sm:$0xff]
        %v287 = vld [vmem:[%s277 + $0x30] sm:$0xff]
        %v288 = vld [vmem:[%s277 + $0x38] sm:$0xff]
        %v289 = vld [vmem:[%s277 + $0x40] sm:$0xff]
        %v290 = vld [vmem:[%s277 + $0x48] sm:$0xff]
        %v291 = vld [vmem:[%s277 + $0x50] sm:$0xff]
        %v292 = vld [vmem:[%s277 + $0x58] sm:$0xff]
        %v293 = vld [vmem:[%s277 + $0x60] sm:$0xff]
        %v294 = vld [vmem:[%s277 + $0x68] sm:$0xff]
        %v295 = vld [vmem:[%s277 + $0x70] sm:$0xff]
        %v296 = vld [vmem:[%s277 + $0x78] sm:$0xff]
        %v297 = vpack.c.bf16 %v282, %v281
        %v298 = vpack.c.bf16 %v284, %v283
        %v299 = vpack.c.bf16 %v286, %v285
        %v300 = vpack.c.bf16 %v288, %v287
        %v301 = vpack.c.bf16 %v290, %v289
        %v302 = vpack.c.bf16 %v292, %v291
        %v303 = vpack.c.bf16 %v294, %v293
        %v304 = vpack.c.bf16 %v296, %v295
        %v305 = vld [vmem:[%s1] sm:$0xf]
        %v306 = vld [vmem:[%s1 + $0x4] sm:$0xf]
        %v307 = vld [vmem:[%s1 + $0x8] sm:$0xf]
        %v308 = vld [vmem:[%s1 + $0xc] sm:$0xf]
        %v309 = vld [vmem:[%s2] sm:$0x1]
        %v311 = vperm.slane %v309, 0
        %v317 = vunpack.c.l.b16 %v305
        %v318 = vunpack.c.l.b16 %v306
        %v319 = vunpack.c.l.b16 %v307
        %v320 = vunpack.c.l.b16 %v308
        %v321 = vpack.c.b16 %v318, %v317
        %v322 = vpack.c.b16 %v320, %v319
        %vm325 = vcmask 261120
        %v327 = vsel %vm325, %v297, 0
        %v330 = vsel %vm325, %v298, 0
        %v333 = vsel %vm325, %v299, 0
        %v336 = vsel %vm325, %v300, 0
        %v339 = vsel %vm325, %v301, 0
        %v342 = vsel %vm325, %v302, 0
        %v345 = vsel %vm325, %v303, 0
        %v348 = vsel %vm325, %v304, 0
        %350 = vmatpush.bf16.msra.mxu0 0
        %351 = vmatpush.bf16.msra.mxu0 0
        %352 = vmatpush.bf16.msra.mxu0 0
        %353 = vmatpush.bf16.msra.mxu0 0
        %354 = vmatpush.bf16.msra.mxu0 0
        %355 = vmatpush.bf16.msra.mxu0 0
        %356 = vmatpush.bf16.msra.mxu0 %v322
        %357 = vmatpush.bf16.msra.mxu0 %v321
        %358 = vmatmul.bf16.gmra.mxu0 %v327
        %v359 = vpop.f32.mrf.mxu0
        %v360 = vadd.f32 %v311, %v359
        %v361 = vpop.f32.mrf.mxu0
        %v362 = vadd.f32 %v311, %v361
        %363 = vmatmul.bf16.gmra.mxu0 %v330
        %v364 = vpop.f32.mrf.mxu0
        %v365 = vadd.f32 %v311, %v364
        %v366 = vpop.f32.mrf.mxu0
        %v367 = vadd.f32 %v311, %v366
        %368 = vmatmul.bf16.gmra.mxu0 %v333
        %v369 = vpop.f32.mrf.mxu0
        %v370 = vadd.f32 %v311, %v369
        %v371 = vpop.f32.mrf.mxu0
        %v372 = vadd.f32 %v311, %v371
        %373 = vmatmul.bf16.gmra.mxu0 %v336
        %v374 = vpop.f32.mrf.mxu0
        %v375 = vadd.f32 %v311, %v374
        %v376 = vpop.f32.mrf.mxu0
        %v377 = vadd.f32 %v311, %v376
        %378 = vmatmul.bf16.gmra.mxu0 %v339
        %v379 = vpop.f32.mrf.mxu0
        %v380 = vadd.f32 %v311, %v379
        %v381 = vpop.f32.mrf.mxu0
        %v382 = vadd.f32 %v311, %v381
        %383 = vmatmul.bf16.gmra.mxu0 %v342
        %v384 = vpop.f32.mrf.mxu0
        %v385 = vadd.f32 %v311, %v384
        %v386 = vpop.f32.mrf.mxu0
        %v387 = vadd.f32 %v311, %v386
        %388 = vmatmul.bf16.gmra.mxu0 %v345
        %v389 = vpop.f32.mrf.mxu0
        %v390 = vadd.f32 %v311, %v389
        %v391 = vpop.f32.mrf.mxu0
        %v392 = vadd.f32 %v311, %v391
        %393 = vmatmul.bf16.gmra.mxu0 %v348
        %v394 = vpop.f32.mrf.mxu0
        %v395 = vadd.f32 %v311, %v394
        %v396 = vpop.f32.mrf.mxu0
        %v397 = vadd.f32 %v311, %v396
        %398 = vdwg.mxu0
        %v399 = vmax.f32 %v360, 0.0
        %v400 = vmax.f32 %v362, 0.0
        %v401 = vmax.f32 %v365, 0.0
        %v402 = vmax.f32 %v367, 0.0
        %v403 = vmax.f32 %v370, 0.0
        %v404 = vmax.f32 %v372, 0.0
        %v405 = vmax.f32 %v375, 0.0
        %v406 = vmax.f32 %v377, 0.0
        %v407 = vmax.f32 %v380, 0.0
        %v408 = vmax.f32 %v382, 0.0
        %v409 = vmax.f32 %v385, 0.0
        %v410 = vmax.f32 %v387, 0.0
        %v411 = vmax.f32 %v390, 0.0
        %v412 = vmax.f32 %v392, 0.0
        %v413 = vmax.f32 %v395, 0.0
        %v414 = vmax.f32 %v397, 0.0
        %v415 = vpack.c.bf16 %v400, %v399
        %v416 = vpack.c.bf16 %v402, %v401
        %v417 = vpack.c.bf16 %v404, %v403
        %v418 = vpack.c.bf16 %v406, %v405
        %v419 = vpack.c.bf16 %v408, %v407
        %v420 = vpack.c.bf16 %v410, %v409
        %v421 = vpack.c.bf16 %v412, %v411
        %v422 = vpack.c.bf16 %v414, %v413
        %v423 = vld [vmem:[%s3] sm:$0xf]
        %v424 = vld [vmem:[%s3 + $0x4] sm:$0xf]
        %v425 = vld [vmem:[%s3 + $0x8] sm:$0xf]
        %v426 = vld [vmem:[%s3 + $0xc] sm:$0xf]
        %v427 = vld [vmem:[%s3 + $0x10] sm:$0xf]
        %v428 = vld [vmem:[%s3 + $0x14] sm:$0xf]
        %v429 = vld [vmem:[%s3 + $0x18] sm:$0xf]
        %v430 = vld [vmem:[%s3 + $0x1c] sm:$0xf]
        %v431 = vld [vmem:[%s3 + $0x20] sm:$0xf]
        %v432 = vld [vmem:[%s3 + $0x24] sm:$0xf]
        %v433 = vld [vmem:[%s3 + $0x28] sm:$0xf]
        %v434 = vld [vmem:[%s3 + $0x2c] sm:$0xf]
        %v435 = vld [vmem:[%s3 + $0x30] sm:$0xf]
        %v436 = vld [vmem:[%s3 + $0x34] sm:$0xf]
        %v437 = vld [vmem:[%s3 + $0x38] sm:$0xf]
        %v438 = vld [vmem:[%s3 + $0x3c] sm:$0xf]
        %v439 = vld [vmem:[%s4] sm:$0x1]
        %v441 = vperm.slane %v439, 0
        %v459 = vunpack.c.l.b16 %v423
        %v460 = vunpack.c.l.b16 %v424
        %v461 = vunpack.c.l.b16 %v425
        %v462 = vunpack.c.l.b16 %v426
        %v463 = vunpack.c.l.b16 %v427
        %v464 = vunpack.c.l.b16 %v428
        %v465 = vunpack.c.l.b16 %v429
        %v466 = vunpack.c.l.b16 %v430
        %v467 = vunpack.c.l.b16 %v431
        %v468 = vunpack.c.l.b16 %v432
        %v469 = vunpack.c.l.b16 %v433
        %v470 = vunpack.c.l.b16 %v434
        %v471 = vunpack.c.l.b16 %v435
        %v472 = vunpack.c.l.b16 %v436
        %v473 = vunpack.c.l.b16 %v437
        %v474 = vunpack.c.l.b16 %v438
        %v475 = vpack.c.b16 %v460, %v459
        %v476 = vpack.c.b16 %v462, %v461
        %v477 = vpack.c.b16 %v464, %v463
        %v478 = vpack.c.b16 %v466, %v465
        %v479 = vpack.c.b16 %v468, %v467
        %v480 = vpack.c.b16 %v470, %v469
        %v481 = vpack.c.b16 %v472, %v471
        %v482 = vpack.c.b16 %v474, %v473
        %491 = vmatpush.bf16.msra.mxu0 %v482
        %492 = vmatpush.bf16.msra.mxu0 %v481
        %493 = vmatpush.bf16.msra.mxu0 %v480
        %494 = vmatpush.bf16.msra.mxu0 %v479
        %495 = vmatpush.bf16.msra.mxu0 %v478
        %496 = vmatpush.bf16.msra.mxu0 %v477
        %497 = vmatpush.bf16.msra.mxu0 %v476
        %498 = vmatpush.bf16.msra.mxu0 %v475
        %499 = vmatmul.bf16.gmra.mxu0 %v415
        %v500 = vpop.f32.mrf.mxu0
        %v501 = vadd.f32 %v441, %v500
        %v502 = vpop.f32.mrf.mxu0
        %v503 = vadd.f32 %v441, %v502
        %504 = vmatmul.bf16.gmra.mxu0 %v416
        %v505 = vpop.f32.mrf.mxu0
        %v506 = vadd.f32 %v441, %v505
        %v507 = vpop.f32.mrf.mxu0
        %v508 = vadd.f32 %v441, %v507
        %509 = vmatmul.bf16.gmra.mxu0 %v417
        %v510 = vpop.f32.mrf.mxu0
        %v511 = vadd.f32 %v441, %v510
        %v512 = vpop.f32.mrf.mxu0
        %v513 = vadd.f32 %v441, %v512
        %514 = vmatmul.bf16.gmra.mxu0 %v418
        %v515 = vpop.f32.mrf.mxu0
        %v516 = vadd.f32 %v441, %v515
        %v517 = vpop.f32.mrf.mxu0
        %v518 = vadd.f32 %v441, %v517
        %519 = vmatmul.bf16.gmra.mxu0 %v419
        %v520 = vpop.f32.mrf.mxu0
        %v521 = vadd.f32 %v441, %v520
        %v522 = vpop.f32.mrf.mxu0
        %v523 = vadd.f32 %v441, %v522
        %524 = vmatmul.bf16.gmra.mxu0 %v420
        %v525 = vpop.f32.mrf.mxu0
        %v526 = vadd.f32 %v441, %v525
        %v527 = vpop.f32.mrf.mxu0
        %v528 = vadd.f32 %v441, %v527
        %529 = vmatmul.bf16.gmra.mxu0 %v421
        %v530 = vpop.f32.mrf.mxu0
        %v531 = vadd.f32 %v441, %v530
        %v532 = vpop.f32.mrf.mxu0
        %v533 = vadd.f32 %v441, %v532
        %534 = vmatmul.bf16.gmra.mxu0 %v422
        %v535 = vpop.f32.mrf.mxu0
        %v536 = vadd.f32 %v441, %v535
        %v537 = vpop.f32.mrf.mxu0
        %v538 = vadd.f32 %v441, %v537
        %539 = vdwg.mxu0
        %v540 = vmax.f32 %v501, 0.0
        %v541 = vmax.f32 %v503, 0.0
        %v542 = vmax.f32 %v506, 0.0
        %v543 = vmax.f32 %v508, 0.0
        %v544 = vmax.f32 %v511, 0.0
        %v545 = vmax.f32 %v513, 0.0
        %v546 = vmax.f32 %v516, 0.0
        %v547 = vmax.f32 %v518, 0.0
        %v548 = vmax.f32 %v521, 0.0
        %v549 = vmax.f32 %v523, 0.0
        %v550 = vmax.f32 %v526, 0.0
        %v551 = vmax.f32 %v528, 0.0
        %v552 = vmax.f32 %v531, 0.0
        %v553 = vmax.f32 %v533, 0.0
        %v554 = vmax.f32 %v536, 0.0
        %v555 = vmax.f32 %v538, 0.0
        %v556 = vpack.c.bf16 %v541, %v540
        %v557 = vpack.c.bf16 %v543, %v542
        %v558 = vpack.c.bf16 %v545, %v544
        %v559 = vpack.c.bf16 %v547, %v546
        %v560 = vpack.c.bf16 %v549, %v548
        %v561 = vpack.c.bf16 %v551, %v550
        %v562 = vpack.c.bf16 %v553, %v552
        %v563 = vpack.c.bf16 %v555, %v554
        %v564 = vld [vmem:[%s5] sm:$0xf]
        %v565 = vld [vmem:[%s5 + $0x4] sm:$0xf]
        %v566 = vld [vmem:[%s5 + $0x8] sm:$0xf]
        %v567 = vld [vmem:[%s5 + $0xc] sm:$0xf]
        %v568 = vld [vmem:[%s5 + $0x10] sm:$0xf]
        %v569 = vld [vmem:[%s5 + $0x14] sm:$0xf]
        %v570 = vld [vmem:[%s5 + $0x18] sm:$0xf]
        %v571 = vld [vmem:[%s5 + $0x1c] sm:$0xf]
        %v572 = vld [vmem:[%s5 + $0x20] sm:$0xf]
        %v573 = vld [vmem:[%s5 + $0x24] sm:$0xf]
        %v574 = vld [vmem:[%s5 + $0x28] sm:$0xf]
        %v575 = vld [vmem:[%s5 + $0x2c] sm:$0xf]
        %v576 = vld [vmem:[%s5 + $0x30] sm:$0xf]
        %v577 = vld [vmem:[%s5 + $0x34] sm:$0xf]
        %v578 = vld [vmem:[%s5 + $0x38] sm:$0xf]
        %v579 = vld [vmem:[%s5 + $0x3c] sm:$0xf]
        %v580 = vld [vmem:[%s6] sm:$0x1]
        %v582 = vperm.slane %v580, 0
        %v600 = vunpack.c.l.b16 %v564
        %v601 = vunpack.c.l.b16 %v565
        %v602 = vunpack.c.l.b16 %v566
        %v603 = vunpack.c.l.b16 %v567
        %v604 = vunpack.c.l.b16 %v568
        %v605 = vunpack.c.l.b16 %v569
        %v606 = vunpack.c.l.b16 %v570
        %v607 = vunpack.c.l.b16 %v571
        %v608 = vunpack.c.l.b16 %v572
        %v609 = vunpack.c.l.b16 %v573
        %v610 = vunpack.c.l.b16 %v574
        %v611 = vunpack.c.l.b16 %v575
        %v612 = vunpack.c.l.b16 %v576
        %v613 = vunpack.c.l.b16 %v577
        %v614 = vunpack.c.l.b16 %v578
        %v615 = vunpack.c.l.b16 %v579
        %v616 = vpack.c.b16 %v601, %v600
        %v617 = vpack.c.b16 %v603, %v602
        %v618 = vpack.c.b16 %v605, %v604
        %v619 = vpack.c.b16 %v607, %v606
        %v620 = vpack.c.b16 %v609, %v608
        %v621 = vpack.c.b16 %v611, %v610
        %v622 = vpack.c.b16 %v613, %v612
        %v623 = vpack.c.b16 %v615, %v614
        %632 = vmatpush.bf16.msra.mxu0 %v623
        %633 = vmatpush.bf16.msra.mxu0 %v622
        %634 = vmatpush.bf16.msra.mxu0 %v621
        %635 = vmatpush.bf16.msra.mxu0 %v620
        %636 = vmatpush.bf16.msra.mxu0 %v619
        %637 = vmatpush.bf16.msra.mxu0 %v618
        %638 = vmatpush.bf16.msra.mxu0 %v617
        %639 = vmatpush.bf16.msra.mxu0 %v616
        %640 = vmatmul.bf16.gmra.mxu0 %v556
        %v641 = vpop.f32.mrf.mxu0
        %v642 = vadd.f32 %v582, %v641
        %v643 = vpop.f32.mrf.mxu0
        %v644 = vadd.f32 %v582, %v643
        %645 = vmatmul.bf16.gmra.mxu0 %v557
        %v646 = vpop.f32.mrf.mxu0
        %v647 = vadd.f32 %v582, %v646
        %v648 = vpop.f32.mrf.mxu0
        %v649 = vadd.f32 %v582, %v648
        %650 = vmatmul.bf16.gmra.mxu0 %v558
        %v651 = vpop.f32.mrf.mxu0
        %v652 = vadd.f32 %v582, %v651
        %v653 = vpop.f32.mrf.mxu0
        %v654 = vadd.f32 %v582, %v653
        %655 = vmatmul.bf16.gmra.mxu0 %v559
        %v656 = vpop.f32.mrf.mxu0
        %v657 = vadd.f32 %v582, %v656
        %v658 = vpop.f32.mrf.mxu0
        %v659 = vadd.f32 %v582, %v658
        %660 = vmatmul.bf16.gmra.mxu0 %v560
        %v661 = vpop.f32.mrf.mxu0
        %v662 = vadd.f32 %v582, %v661
        %v663 = vpop.f32.mrf.mxu0
        %v664 = vadd.f32 %v582, %v663
        %665 = vmatmul.bf16.gmra.mxu0 %v561
        %v666 = vpop.f32.mrf.mxu0
        %v667 = vadd.f32 %v582, %v666
        %v668 = vpop.f32.mrf.mxu0
        %v669 = vadd.f32 %v582, %v668
        %670 = vmatmul.bf16.gmra.mxu0 %v562
        %v671 = vpop.f32.mrf.mxu0
        %v672 = vadd.f32 %v582, %v671
        %v673 = vpop.f32.mrf.mxu0
        %v674 = vadd.f32 %v582, %v673
        %675 = vmatmul.bf16.gmra.mxu0 %v563
        %v676 = vpop.f32.mrf.mxu0
        %v677 = vadd.f32 %v582, %v676
        %v678 = vpop.f32.mrf.mxu0
        %v679 = vadd.f32 %v582, %v678
        %680 = vdwg.mxu0
        %v681 = vpack.c.bf16 %v642, %v642
        %v682 = vpack.c.bf16 %v644, %v644
        %v683 = vpack.c.bf16 %v647, %v647
        %v684 = vpack.c.bf16 %v649, %v649
        %v685 = vpack.c.bf16 %v652, %v652
        %v686 = vpack.c.bf16 %v654, %v654
        %v687 = vpack.c.bf16 %v657, %v657
        %v688 = vpack.c.bf16 %v659, %v659
        %v689 = vpack.c.bf16 %v662, %v662
        %v690 = vpack.c.bf16 %v664, %v664
        %v691 = vpack.c.bf16 %v667, %v667
        %v692 = vpack.c.bf16 %v669, %v669
        %v693 = vpack.c.bf16 %v672, %v672
        %v694 = vpack.c.bf16 %v674, %v674
        %v695 = vpack.c.bf16 %v677, %v677
        %v696 = vpack.c.bf16 %v679, %v679
        %697 = vst [vmem:[%s272] sm:$0xf] %v681
        %698 = vst [vmem:[%s272 + $0x4] sm:$0xf] %v682
        %699 = vst [vmem:[%s272 + $0x8] sm:$0xf] %v683
        %700 = vst [vmem:[%s272 + $0xc] sm:$0xf] %v684
        %701 = vst [vmem:[%s272 + $0x10] sm:$0xf] %v685
        %702 = vst [vmem:[%s272 + $0x14] sm:$0xf] %v686
        %703 = vst [vmem:[%s272 + $0x18] sm:$0xf] %v687
        %704 = vst [vmem:[%s272 + $0x1c] sm:$0xf] %v688
        %705 = vst [vmem:[%s272 + $0x20] sm:$0xf] %v689
        %706 = vst [vmem:[%s272 + $0x24] sm:$0xf] %v690
        %707 = vst [vmem:[%s272 + $0x28] sm:$0xf] %v691
        %708 = vst [vmem:[%s272 + $0x2c] sm:$0xf] %v692
        %709 = vst [vmem:[%s272 + $0x30] sm:$0xf] %v693
        %710 = vst [vmem:[%s272 + $0x34] sm:$0xf] %v694
        %711 = vst [vmem:[%s272 + $0x38] sm:$0xf] %v695
        %712 = vst [vmem:[%s272 + $0x3c] sm:$0xf] %v696
        %s713 = sand.u32 %s181, 1
        %s714 = scalar_lea.sflag [#allocation3], %s713
        %s715 = sand.u32 %s181, 1
        %s716 = smul.addr %s715, 64
        %s717 = scalar_lea.vmem [#allocation2], %s716
        // Predicated region
        $region49: #{tpu_custom_call.1} parent=47 // pred_check
          %p718 = pneg %p191
        $region50: #{tpu_custom_call.1} parent=47 // pred_check_branch
          %720 = sbr.rel (%p718) target = $region52
        $region51: #{tpu_custom_call.1} parent=47 // pred_region
          %s721 = smul.u32 16, %s21
          %723 = vsyncadd %s714, 0
          %s724 = smul.addr %s721, 4
          %s725 = scalar_lea.hbm %s7, %s724
          %s726 = sshll.u32 %s717, 4
          %s727 = int_to_ptr.vmem [resolvable:$true] %s726
          %s728 = sshll.u32 %s725, 4
          %s729 = int_to_ptr.hbm [resolvable:$true] %s728
          %734 = dma.vmem_to_hbm [thread:$0]  %s727, 1024, %s729, %s714, 64, 64, 4
        $region52: #{tpu_custom_call.1} parent=47 // pred_fallthru
          _
      $region48: #{tpu_custom_call.1} parent=5 // pred_fallthru
        _
      %p735 = scmp.le.s32.totalorder 2, %s16
      // Predicated region
      $region53: #{tpu_custom_call.1} parent=5 // pred_check
        %p736 = pneg %p735
      $region54: #{tpu_custom_call.1} parent=5 // pred_check_branch
        %738 = sbr.rel (%p736) target = $region56
      $region55: #{tpu_custom_call.1} parent=5 // pred_region
        %s739 = ssub.s32 %s16, 2
        // Predicated region
        $region57: #{tpu_custom_call.1} parent=55 // pred_check
          %p740 = pneg %p197
        $region58: #{tpu_custom_call.1} parent=55 // pred_check_branch
          %742 = sbr.rel (%p740) target = $region60
        $region59: #{tpu_custom_call.1} parent=55 // pred_region
          %s743 = sand.u32 %s182, 1
          %s744 = scalar_lea.sflag [#allocation3], %s743
          %s745 = sand.u32 %s182, 1
          %s746 = smul.addr %s745, 64
          %s747 = scalar_lea.vmem [#allocation2], %s746
          %749 = dma.done %s744, 1024
        $region60: #{tpu_custom_call.1} parent=55 // pred_fallthru
          _
      $region56: #{tpu_custom_call.1} parent=5 // pred_fallthru
        _
    $region6: #{tpu_custom_call.1} parent=1 // loop_footer
      %s20 = sadd.s32 1, %s16
    $region7: #{tpu_custom_call.1} parent=1 // loop_footer_branch
      %15 = sbr.rel target = $region3
    $region8: #{tpu_custom_call.1} parent=1 // loop_exit
      _
    %750 = vsyncpa [#allocation3], 1
    %s751 = scalar_lea.sflag [#allocation3], 1
    %752 = vsyncpa %s751, 1

</llo_original>
